<compile_context>
chip_gen: v7x
topology: tpu7x:2x2x1
jax: 0.10.0
libtpu: 0.0.40
codegen_flags: <defaults>
</compile_context>

<pallas_src>
import jax
import jax.numpy as jnp
from jax.experimental import pallas as pl
from jax.experimental.pallas import tpu as pltpu

# Context-window hyperparameters implied by the module: (p + 1 + s) * 100
P = 2
S = 2
EMB = 100
D_IN = (P + 1 + S) * EMB          # 500
D_IN_PAD = 512                     # lane-aligned input feature dim
H1 = 256
H2 = 64
D_OUT = 14
D_OUT_PAD = 128                    # lane-dense output width (sliced to 14 outside)


def _round_up(n, m):
    return ((n + m - 1) // m) * m


def ffnn_kernel(x_ref, w1_ref, b1_ref, w2_ref, b2_ref, w3_ref, b3_ref, o_ref):
    # fc1 + relu   (bf16 operands, f32 accumulation on the MXU)
    h = jnp.dot(x_ref[...], w1_ref[...], preferred_element_type=jnp.float32)
    h = jnp.maximum(h + b1_ref[...], 0.0)
    # fc3 + relu
    h = jnp.dot(h.astype(jnp.bfloat16), w2_ref[...],
                preferred_element_type=jnp.float32)
    h = jnp.maximum(h + b2_ref[...], 0.0)
    # fc4 (no activation)
    o = jnp.dot(h.astype(jnp.bfloat16), w3_ref[...],
                preferred_element_type=jnp.float32)
    o_ref[...] = (o + b3_ref[...]).astype(o_ref.dtype)


def neural_network_forward(x, params):
    """x: (B, p+1+s, EMB) float32 -> logits (B, 14) float32."""
    w1, b1, w2, b2, w3, b3 = params          # f32, weights stored (in, out)
    B = x.shape[0]
    x_flat = x.reshape(B, -1)                # torch.flatten(x, start_dim=1)

    # --- layout / dtype plumbing (zero-padding, bf16 cast) -------------------
    x_p = jnp.pad(x_flat, ((0, 0), (0, D_IN_PAD - D_IN))).astype(jnp.bfloat16)
    w1_p = jnp.pad(w1, ((0, D_IN_PAD - D_IN), (0, 0))).astype(jnp.bfloat16)
    w2_p = w2.astype(jnp.bfloat16)
    w3_p = jnp.pad(w3, ((0, 0), (0, D_OUT_PAD - D_OUT))).astype(jnp.bfloat16)
    b3_p = jnp.pad(b3, ((0, 0), (0, D_OUT_PAD - D_OUT)))   # bias kept f32

    # --- batch tiling: stream activations, keep weights VMEM-resident --------
    TB = min(128, _round_up(B, 8))
    nb = pl.cdiv(B, TB)
    B_pad = nb * TB
    if B_pad != B:
        x_p = jnp.pad(x_p, ((0, B_pad - B), (0, 0)))

    resident = lambda i: (0, 0)              # same block every grid step

    out = pl.pallas_call(
        ffnn_kernel,
        out_shape=jax.ShapeDtypeStruct((B_pad, D_OUT_PAD), jnp.float32),
        grid=(nb,),
        in_specs=[
            pl.BlockSpec((TB, D_IN_PAD), lambda i: (i, 0)),   # activations
            pl.BlockSpec((D_IN_PAD, H1), resident),           # w1 (resident)
            pl.BlockSpec((1, H1), resident),                  # b1
            pl.BlockSpec((H1, H2), resident),                 # w2
            pl.BlockSpec((1, H2), resident),                  # b2
            pl.BlockSpec((H2, D_OUT_PAD), resident),          # w3
            pl.BlockSpec((1, D_OUT_PAD), resident),           # b3
        ],
        out_specs=pl.BlockSpec((TB, D_OUT_PAD), lambda i: (i, 0)),
        compiler_params=pltpu.CompilerParams(
            dimension_semantics=("parallel",)),
    )(x_p, w1_p, b1, w2_p, b2, w3_p, b3_p)

    return out[:B, :D_OUT]


def init_params(key):
    """Deterministic init mimicking nn.Linear default (uniform +/- 1/sqrt(fan_in)).
    Weights are stored transposed, shape (in, out), float32."""
    def linear(k, fan_in, fan_out):
        kw, kb = jax.random.split(k)
        bound = 1.0 / jnp.sqrt(fan_in)
        w = jax.random.uniform(kw, (fan_in, fan_out), jnp.float32, -bound, bound)
        b = jax.random.uniform(kb, (1, fan_out), jnp.float32, -bound, bound)
        return w, b

    k1, k2, k3 = jax.random.split(key, 3)
    w1, b1 = linear(k1, D_IN, H1)
    w2, b2 = linear(k2, H1, H2)
    w3, b3 = linear(k3, H2, D_OUT)
    return (w1, b1, w2, b2, w3, b3)


if __name__ == "__main__":
    key = jax.random.PRNGKey(0)
    kx, kp = jax.random.split(key)

    B = 8
    x = jax.random.normal(kx, (B, P + 1 + S, EMB), dtype=jnp.float32)
    params = init_params(kp)

    out = neural_network_forward(x, params)
    jax.block_until_ready(out)

    # sanity check against a pure-JAX reference using the same bf16 weight cast
    w1, b1, w2, b2, w3, b3 = params
    xf = x.reshape(B, -1).astype(jnp.bfloat16)
    ref = jnp.dot(xf, w1.astype(jnp.bfloat16),
                  preferred_element_type=jnp.float32)
    ref = jnp.maximum(ref + b1, 0.0)
    ref = jnp.dot(ref.astype(jnp.bfloat16), w2.astype(jnp.bfloat16),
                  preferred_element_type=jnp.float32)
    ref = jnp.maximum(ref + b2, 0.0)
    ref = jnp.dot(ref.astype(jnp.bfloat16), w3.astype(jnp.bfloat16),
                  preferred_element_type=jnp.float32) + b3

    assert out.shape == (B, D_OUT)
    assert jnp.allclose(out, ref, atol=2e-2, rtol=2e-2)

    print("KERNEL_OK")
</pallas_src>

<mosaic_0001>
module attributes {stable_mosaic.version = 11 : i64} {
  func.func @ffnn_kernel(%arg0: i32, %arg1: memref<8x512xbf16, #tpu.memory_space<vmem>>, %arg2: memref<512x256xbf16, #tpu.memory_space<vmem>>, %arg3: memref<1x256xf32, #tpu.memory_space<vmem>>, %arg4: memref<256x64xbf16, #tpu.memory_space<vmem>>, %arg5: memref<1x64xf32, #tpu.memory_space<vmem>>, %arg6: memref<64x128xbf16, #tpu.memory_space<vmem>>, %arg7: memref<1x128xf32, #tpu.memory_space<vmem>>, %arg8: memref<8x128xf32, #tpu.memory_space<vmem>>) attributes {dimension_semantics = [#tpu.dimension_semantics<parallel>], iteration_bounds = array<i64: 1>, scalar_prefetch = 0 : i64, scratch_operands = 0 : i64, tpu.core_type = #tpu.core_type<tc>, window_params = [{transform_indices = @transform_0, window_bounds = array<i64: 8, 512>}, {pipeline_mode = #tpu.pipeline_mode<synchronous>, transform_indices = @transform_1, window_bounds = array<i64: 512, 256>}, {pipeline_mode = #tpu.pipeline_mode<synchronous>, transform_indices = @transform_2, window_bounds = array<i64: 1, 256>}, {pipeline_mode = #tpu.pipeline_mode<synchronous>, transform_indices = @transform_3, window_bounds = array<i64: 256, 64>}, {pipeline_mode = #tpu.pipeline_mode<synchronous>, transform_indices = @transform_4, window_bounds = array<i64: 1, 64>}, {pipeline_mode = #tpu.pipeline_mode<synchronous>, transform_indices = @transform_5, window_bounds = array<i64: 64, 128>}, {pipeline_mode = #tpu.pipeline_mode<synchronous>, transform_indices = @transform_6, window_bounds = array<i64: 1, 128>}, {transform_indices = @transform_7, window_bounds = array<i64: 8, 128>}]} {
    %c0 = arith.constant 0 : index
    %c0_0 = arith.constant 0 : index
    %0 = vector.load %arg1[%c0, %c0_0] : memref<8x512xbf16, #tpu.memory_space<vmem>>, vector<8x512xbf16>
    %c0_1 = arith.constant 0 : index
    %c0_2 = arith.constant 0 : index
    %1 = vector.load %arg2[%c0_1, %c0_2] : memref<512x256xbf16, #tpu.memory_space<vmem>>, vector<512x256xbf16>
    %cst = arith.constant dense<0.000000e+00> : vector<8x256xf32>
    %2 = tpu.matmul %0, %1, %cst {dimension_numbers = #tpu.dot_dimension_numbers<[1], [0], [0], [1], [0, 0, 1, 1], [], []>} : vector<8x512xbf16>, vector<512x256xbf16>, vector<8x256xf32> -> vector<8x256xf32>
    %c0_3 = arith.constant 0 : index
    %c0_4 = arith.constant 0 : index
    %3 = vector.load %arg3[%c0_3, %c0_4] : memref<1x256xf32, #tpu.memory_space<vmem>>, vector<1x256xf32>
    %4 = vector.broadcast %3 : vector<1x256xf32> to vector<8x256xf32>
    %5 = arith.addf %2, %4 : vector<8x256xf32>
    %cst_5 = arith.constant 0.000000e+00 : f32
    %6 = vector.broadcast %cst_5 : f32 to vector<8x256xf32>
    %7 = arith.maximumf %5, %6 : vector<8x256xf32>
    %8 = arith.truncf %7 : vector<8x256xf32> to vector<8x256xbf16>
    %c0_6 = arith.constant 0 : index
    %c0_7 = arith.constant 0 : index
    %9 = vector.load %arg4[%c0_6, %c0_7] : memref<256x64xbf16, #tpu.memory_space<vmem>>, vector<256x64xbf16>
    %cst_8 = arith.constant dense<0.000000e+00> : vector<8x64xf32>
    %10 = tpu.matmul %8, %9, %cst_8 {dimension_numbers = #tpu.dot_dimension_numbers<[1], [0], [0], [1], [0, 0, 1, 1], [], []>} : vector<8x256xbf16>, vector<256x64xbf16>, vector<8x64xf32> -> vector<8x64xf32>
    %c0_9 = arith.constant 0 : index
    %c0_10 = arith.constant 0 : index
    %11 = vector.load %arg5[%c0_9, %c0_10] : memref<1x64xf32, #tpu.memory_space<vmem>>, vector<1x64xf32>
    %12 = vector.broadcast %11 : vector<1x64xf32> to vector<8x64xf32>
    %13 = arith.addf %10, %12 : vector<8x64xf32>
    %cst_11 = arith.constant 0.000000e+00 : f32
    %14 = vector.broadcast %cst_11 : f32 to vector<8x64xf32>
    %15 = arith.maximumf %13, %14 : vector<8x64xf32>
    %16 = arith.truncf %15 : vector<8x64xf32> to vector<8x64xbf16>
    %c0_12 = arith.constant 0 : index
    %c0_13 = arith.constant 0 : index
    %17 = vector.load %arg6[%c0_12, %c0_13] : memref<64x128xbf16, #tpu.memory_space<vmem>>, vector<64x128xbf16>
    %cst_14 = arith.constant dense<0.000000e+00> : vector<8x128xf32>
    %18 = tpu.matmul %16, %17, %cst_14 {dimension_numbers = #tpu.dot_dimension_numbers<[1], [0], [0], [1], [0, 0, 1, 1], [], []>} : vector<8x64xbf16>, vector<64x128xbf16>, vector<8x128xf32> -> vector<8x128xf32>
    %c0_15 = arith.constant 0 : index
    %c0_16 = arith.constant 0 : index
    %19 = vector.load %arg7[%c0_15, %c0_16] : memref<1x128xf32, #tpu.memory_space<vmem>>, vector<1x128xf32>
    %20 = vector.broadcast %19 : vector<1x128xf32> to vector<8x128xf32>
    %21 = arith.addf %18, %20 : vector<8x128xf32>
    %c0_17 = arith.constant 0 : index
    %c0_18 = arith.constant 0 : index
    %22 = vector.load %arg8[%c0_17, %c0_18] : memref<8x128xf32, #tpu.memory_space<vmem>>, vector<8x128xf32>
    tpu.vector_store %arg8[%c0_17, %c0_18], %21 {strides = array<i32>} : memref<8x128xf32, #tpu.memory_space<vmem>>, vector<8x128xf32>,
    return
  }
  func.func @transform_0(%arg0: i32) -> (i32, i32) {
    %c0_i32 = arith.constant 0 : i32
    %c0_i32_0 = arith.constant 0 : i32
    return %arg0, %c0_i32 : i32, i32
  }
  func.func @transform_1(%arg0: i32) -> (i32, i32) {
    %c0_i32 = arith.constant 0 : i32
    %c0_i32_0 = arith.constant 0 : i32
    %c0_i32_1 = arith.constant 0 : i32
    return %c0_i32, %c0_i32_0 : i32, i32
  }
  func.func @transform_2(%arg0: i32) -> (i32, i32) {
    %c0_i32 = arith.constant 0 : i32
    %c0_i32_0 = arith.constant 0 : i32
    %c0_i32_1 = arith.constant 0 : i32
    return %c0_i32, %c0_i32_0 : i32, i32
  }
  func.func @transform_3(%arg0: i32) -> (i32, i32) {
    %c0_i32 = arith.constant 0 : i32
    %c0_i32_0 = arith.constant 0 : i32
    %c0_i32_1 = arith.constant 0 : i32
    return %c0_i32, %c0_i32_0 : i32, i32
  }
  func.func @transform_4(%arg0: i32) -> (i32, i32) {
    %c0_i32 = arith.constant 0 : i32
    %c0_i32_0 = arith.constant 0 : i32
    %c0_i32_1 = arith.constant 0 : i32
    return %c0_i32, %c0_i32_0 : i32, i32
  }
  func.func @transform_5(%arg0: i32) -> (i32, i32) {
    %c0_i32 = arith.constant 0 : i32
    %c0_i32_0 = arith.constant 0 : i32
    %c0_i32_1 = arith.constant 0 : i32
    return %c0_i32, %c0_i32_0 : i32, i32
  }
  func.func @transform_6(%arg0: i32) -> (i32, i32) {
    %c0_i32 = arith.constant 0 : i32
    %c0_i32_0 = arith.constant 0 : i32
    %c0_i32_1 = arith.constant 0 : i32
    return %c0_i32, %c0_i32_0 : i32, i32
  }
  func.func @transform_7(%arg0: i32) -> (i32, i32) {
    %c0_i32 = arith.constant 0 : i32
    %c0_i32_0 = arith.constant 0 : i32
    return %arg0, %c0_i32 : i32, i32
  }
}

</mosaic_0001>

<llo_original>
// kernel: tpu_custom_call.1
$region0: #{tpu_custom_call.1}
  #allocation0 [shape = 'u32[]', space=smem, size = 0x4, offset = 0x4, fixed_abs, tag = 'smem constant byte address 0x4 - core index']
  #allocation1 [shape = 'u32[144,128]{1,0:T(1,128)}', space=vmem, size = 0x12000, scoped, tag = 'internal scratch']
  %s0 = inlined_call_operand.vmem [shape: bf16[8,512], index: 0, kind: input, shape index: {}]
  %s1 = inlined_call_operand.hbm [shape: bf16[512,256], index: 1, kind: input, shape index: {}]
  %s2 = inlined_call_operand.vmem [shape: f32[1,256], index: 2, kind: input, shape index: {}]
  %s3 = inlined_call_operand.vmem [shape: bf16[256,64], index: 3, kind: input, shape index: {}]
  %s4 = inlined_call_operand.vmem [shape: f32[1,64], index: 4, kind: input, shape index: {}]
  %s5 = inlined_call_operand.vmem [shape: bf16[64,128], index: 5, kind: input, shape index: {}]
  %s6 = inlined_call_operand.vmem [shape: f32[1,128], index: 6, kind: input, shape index: {}]
  %s7 = inlined_call_operand.hbm [shape: f32[8,128], index: 7, kind: output, shape index: {}]
  %s8 = sld [smem:[#allocation0]]
  $region42: #{tpu_custom_call.1} parent=0
    _
  %s10 = ssub.s32 1, %s8
  %s11 = scalar_select 0, %s10, %s8
  $region1: #{tpu_custom_call.1} parent=0
    #allocation2 [shape = 'u8[262144]{0}', space=vmem, size = 0x40000, scoped, tag = 'input window, operand 1, single buffered']
    #allocation3 [shape = 's32[1]{0}', space=sflag, size = 0x4, scoped, tag = 'scoped memory for tpu_custom_call.1']
    #allocation4 [shape = 's32[1]{0}', space=sflag, size = 0x4, scoped, tag = 'scoped memory for tpu_custom_call.1']
    #allocation5 [shape = 'u8[4096]{0}', space=vmem, size = 0x1000, scoped, tag = 'output window, operand 0, single buffered']
    %12 = vsyncpa [#allocation3], 0
    %13 = vsyncpa [#allocation4], 0
    // Predicated region
    $region2: #{tpu_custom_call.1} parent=1 // pred_check
      _
    $region3: #{tpu_custom_call.1} parent=1 // pred_check_branch
      %15 = sbr.rel (0) target = $region5
    $region4: #{tpu_custom_call.1} parent=1 // pred_region
      _
    $region5: #{tpu_custom_call.1} parent=1 // pred_fallthru
      _
    // Predicated region
    $region6: #{tpu_custom_call.1} parent=1 // pred_check
      _
    $region7: #{tpu_custom_call.1} parent=1 // pred_check_branch
      %17 = sbr.rel (0) target = $region9
    $region8: #{tpu_custom_call.1} parent=1 // pred_region
      %s19 = ssub.s32 8192, 8192
      %20 = vsyncadd [#allocation3], %s19
      %s21 = sshll.u32 [#allocation2], 4
      %s22 = int_to_ptr.vmem [resolvable:$true] %s21
      %27 = dma.hbm_to_vmem [thread:$0]  %s1, 8192, %s22, [#allocation3], 128, 128, 8
    $region9: #{tpu_custom_call.1} parent=1 // pred_fallthru
      _
    // Predicated region
    $region10: #{tpu_custom_call.1} parent=1 // pred_check
      _
    $region11: #{tpu_custom_call.1} parent=1 // pred_check_branch
      %29 = sbr.rel (0) target = $region13
    $region12: #{tpu_custom_call.1} parent=1 // pred_region
      _
    $region13: #{tpu_custom_call.1} parent=1 // pred_fallthru
      _
    // Predicated region
    $region14: #{tpu_custom_call.1} parent=1 // pred_check
      _
    $region15: #{tpu_custom_call.1} parent=1 // pred_check_branch
      %31 = sbr.rel (0) target = $region17
    $region16: #{tpu_custom_call.1} parent=1 // pred_region
      _
    $region17: #{tpu_custom_call.1} parent=1 // pred_fallthru
      _
    // Predicated region
    $region18: #{tpu_custom_call.1} parent=1 // pred_check
      _
    $region19: #{tpu_custom_call.1} parent=1 // pred_check_branch
      %33 = sbr.rel (0) target = $region21
    $region20: #{tpu_custom_call.1} parent=1 // pred_region
      _
    $region21: #{tpu_custom_call.1} parent=1 // pred_fallthru
      _
    // Predicated region
    $region22: #{tpu_custom_call.1} parent=1 // pred_check
      _
    $region23: #{tpu_custom_call.1} parent=1 // pred_check_branch
      %35 = sbr.rel (0) target = $region25
    $region24: #{tpu_custom_call.1} parent=1 // pred_region
      _
    $region25: #{tpu_custom_call.1} parent=1 // pred_fallthru
      _
    // Predicated region
    $region26: #{tpu_custom_call.1} parent=1 // pred_check
      _
    $region27: #{tpu_custom_call.1} parent=1 // pred_check_branch
      %37 = sbr.rel (0) target = $region29
    $region28: #{tpu_custom_call.1} parent=1 // pred_region
      _
    $region29: #{tpu_custom_call.1} parent=1 // pred_fallthru
      _
    // Predicated region
    $region30: #{tpu_custom_call.1} parent=1 // pred_check
      _
    $region31: #{tpu_custom_call.1} parent=1 // pred_check_branch
      %39 = sbr.rel (0) target = $region33
    $region32: #{tpu_custom_call.1} parent=1 // pred_region
      %40 = dma.done [#allocation3], 8192
    $region33: #{tpu_custom_call.1} parent=1 // pred_fallthru
      _
    %v42 = vld [vmem:[%s0] sm:$0xff]
    %v43 = vld [vmem:[%s0 + $0x8] sm:$0xff]
    %v44 = vld [vmem:[#allocation2] sm:$0xff]
    %v45 = vld [vmem:[#allocation2 + $0x8] sm:$0xff]
    %v46 = vld [vmem:[#allocation2 + $0x10] sm:$0xff]
    %v47 = vld [vmem:[#allocation2 + $0x18] sm:$0xff]
    %v48 = vld [vmem:[#allocation2 + $0x20] sm:$0xff]
    %v49 = vld [vmem:[#allocation2 + $0x28] sm:$0xff]
    %v50 = vld [vmem:[#allocation2 + $0x30] sm:$0xff]
    %v51 = vld [vmem:[#allocation2 + $0x38] sm:$0xff]
    %v52 = vld [vmem:[#allocation2 + $0x40] sm:$0xff]
    %v53 = vld [vmem:[#allocation2 + $0x48] sm:$0xff]
    %v54 = vld [vmem:[#allocation2 + $0x50] sm:$0xff]
    %v55 = vld [vmem:[#allocation2 + $0x58] sm:$0xff]
    %v56 = vld [vmem:[#allocation2 + $0x60] sm:$0xff]
    %v57 = vld [vmem:[#allocation2 + $0x68] sm:$0xff]
    %v58 = vld [vmem:[#allocation2 + $0x70] sm:$0xff]
    %v59 = vld [vmem:[#allocation2 + $0x78] sm:$0xff]
    %v60 = vld [vmem:[#allocation2 + $0x80] sm:$0xff]
    %v61 = vld [vmem:[#allocation2 + $0x88] sm:$0xff]
    %v62 = vld [vmem:[#allocation2 + $0x90] sm:$0xff]
    %v63 = vld [vmem:[#allocation2 + $0x98] sm:$0xff]
    %v64 = vld [vmem:[#allocation2 + $0xa0] sm:$0xff]
    %v65 = vld [vmem:[#allocation2 + $0xa8] sm:$0xff]
    %v66 = vld [vmem:[#allocation2 + $0xb0] sm:$0xff]
    %v67 = vld [vmem:[#allocation2 + $0xb8] sm:$0xff]
    %v68 = vld [vmem:[#allocation2 + $0xc0] sm:$0xff]
    %v69 = vld [vmem:[#allocation2 + $0xc8] sm:$0xff]
    %v70 = vld [vmem:[#allocation2 + $0xd0] sm:$0xff]
    %v71 = vld [vmem:[#allocation2 + $0xd8] sm:$0xff]
    %v72 = vld [vmem:[#allocation2 + $0xe0] sm:$0xff]
    %v73 = vld [vmem:[#allocation2 + $0xe8] sm:$0xff]
    %v74 = vld [vmem:[#allocation2 + $0xf0] sm:$0xff]
    %v75 = vld [vmem:[#allocation2 + $0xf8] sm:$0xff]
    %v76 = vld [vmem:[#allocation2 + $0x100] sm:$0xff]
    %v77 = vld [vmem:[#allocation2 + $0x108] sm:$0xff]
    %v78 = vld [vmem:[#allocation2 + $0x110] sm:$0xff]
    %v79 = vld [vmem:[#allocation2 + $0x118] sm:$0xff]
    %v80 = vld [vmem:[#allocation2 + $0x120] sm:$0xff]
    %v81 = vld [vmem:[#allocation2 + $0x128] sm:$0xff]
    %v82 = vld [vmem:[#allocation2 + $0x130] sm:$0xff]
    %v83 = vld [vmem:[#allocation2 + $0x138] sm:$0xff]
    %v84 = vld [vmem:[#allocation2 + $0x140] sm:$0xff]
    %v85 = vld [vmem:[#allocation2 + $0x148] sm:$0xff]
    %v86 = vld [vmem:[#allocation2 + $0x150] sm:$0xff]
    %v87 = vld [vmem:[#allocation2 + $0x158] sm:$0xff]
    %v88 = vld [vmem:[#allocation2 + $0x160] sm:$0xff]
    %v89 = vld [vmem:[#allocation2 + $0x168] sm:$0xff]
    %v90 = vld [vmem:[#allocation2 + $0x170] sm:$0xff]
    %v91 = vld [vmem:[#allocation2 + $0x178] sm:$0xff]
    %v92 = vld [vmem:[#allocation2 + $0x180] sm:$0xff]
    %v93 = vld [vmem:[#allocation2 + $0x188] sm:$0xff]
    %v94 = vld [vmem:[#allocation2 + $0x190] sm:$0xff]
    %v95 = vld [vmem:[#allocation2 + $0x198] sm:$0xff]
    %v96 = vld [vmem:[#allocation2 + $0x1a0] sm:$0xff]
    %v97 = vld [vmem:[#allocation2 + $0x1a8] sm:$0xff]
    %v98 = vld [vmem:[#allocation2 + $0x1b0] sm:$0xff]
    %v99 = vld [vmem:[#allocation2 + $0x1b8] sm:$0xff]
    %v100 = vld [vmem:[#allocation2 + $0x1c0] sm:$0xff]
    %v101 = vld [vmem:[#allocation2 + $0x1c8] sm:$0xff]
    %v102 = vld [vmem:[#allocation2 + $0x1d0] sm:$0xff]
    %v103 = vld [vmem:[#allocation2 + $0x1d8] sm:$0xff]
    %v104 = vld [vmem:[#allocation2 + $0x1e0] sm:$0xff]
    %v105 = vld [vmem:[#allocation2 + $0x1e8] sm:$0xff]
    %v106 = vld [vmem:[#allocation2 + $0x1f0] sm:$0xff]
    %v107 = vld [vmem:[#allocation2 + $0x1f8] sm:$0xff]
    %v108 = vld [vmem:[%s2] sm:$0x3]
    %v110 = vlaneseq
    %v111 = vshrl.u32 %v110, 7
    %v112 = vsub.s32 0, %v111
    %v113 = vrot.slane %v108, %v112
    %v114 = vlaneseq
    %v115 = vshrl.u32 %v114, 7
    %v116 = vsub.s32 1, %v115
    %v117 = vrot.slane %v108, %v116
    %v122 = vunpack.c.l.b16 %v42
    %v123 = vunpack.c.h.b16 %v42
    %v124 = vunpack.c.l.b16 %v43
    %v125 = vunpack.c.h.b16 %v43
    %v126 = vpack.c.b16 %v122, %v122
    %v127 = vpack.c.b16 %v123, %v123
    %v128 = vpack.c.b16 %v124, %v124
    %v129 = vpack.c.b16 %v125, %v125
    %v198 = vunpack.c.l.b16 %v44
    %v199 = vunpack.c.h.b16 %v44
    %v200 = vunpack.c.l.b16 %v45
    %v201 = vunpack.c.h.b16 %v45
    %v202 = vunpack.c.l.b16 %v46
    %v203 = vunpack.c.h.b16 %v46
    %v204 = vunpack.c.l.b16 %v47
    %v205 = vunpack.c.h.b16 %v47
    %v206 = vunpack.c.l.b16 %v48
    %v207 = vunpack.c.h.b16 %v48
    %v208 = vunpack.c.l.b16 %v49
    %v209 = vunpack.c.h.b16 %v49
    %v210 = vunpack.c.l.b16 %v50
    %v211 = vunpack.c.h.b16 %v50
    %v212 = vunpack.c.l.b16 %v51
    %v213 = vunpack.c.h.b16 %v51
    %v214 = vunpack.c.l.b16 %v52
    %v215 = vunpack.c.h.b16 %v52
    %v216 = vunpack.c.l.b16 %v53
    %v217 = vunpack.c.h.b16 %v53
    %v218 = vunpack.c.l.b16 %v54
    %v219 = vunpack.c.h.b16 %v54
    %v220 = vunpack.c.l.b16 %v55
    %v221 = vunpack.c.h.b16 %v55
    %v222 = vunpack.c.l.b16 %v56
    %v223 = vunpack.c.h.b16 %v56
    %v224 = vunpack.c.l.b16 %v57
    %v225 = vunpack.c.h.b16 %v57
    %v226 = vunpack.c.l.b16 %v58
    %v227 = vunpack.c.h.b16 %v58
    %v228 = vunpack.c.l.b16 %v59
    %v229 = vunpack.c.h.b16 %v59
    %v230 = vunpack.c.l.b16 %v60
    %v231 = vunpack.c.h.b16 %v60
    %v232 = vunpack.c.l.b16 %v61
    %v233 = vunpack.c.h.b16 %v61
    %v234 = vunpack.c.l.b16 %v62
    %v235 = vunpack.c.h.b16 %v62
    %v236 = vunpack.c.l.b16 %v63
    %v237 = vunpack.c.h.b16 %v63
    %v238 = vunpack.c.l.b16 %v64
    %v239 = vunpack.c.h.b16 %v64
    %v240 = vunpack.c.l.b16 %v65
    %v241 = vunpack.c.h.b16 %v65
    %v242 = vunpack.c.l.b16 %v66
    %v243 = vunpack.c.h.b16 %v66
    %v244 = vunpack.c.l.b16 %v67
    %v245 = vunpack.c.h.b16 %v67
    %v246 = vunpack.c.l.b16 %v68
    %v247 = vunpack.c.h.b16 %v68
    %v248 = vunpack.c.l.b16 %v69
    %v249 = vunpack.c.h.b16 %v69
    %v250 = vunpack.c.l.b16 %v70
    %v251 = vunpack.c.h.b16 %v70
    %v252 = vunpack.c.l.b16 %v71
    %v253 = vunpack.c.h.b16 %v71
    %v254 = vunpack.c.l.b16 %v72
    %v255 = vunpack.c.h.b16 %v72
    %v256 = vunpack.c.l.b16 %v73
    %v257 = vunpack.c.h.b16 %v73
    %v258 = vunpack.c.l.b16 %v74
    %v259 = vunpack.c.h.b16 %v74
    %v260 = vunpack.c.l.b16 %v75
    %v261 = vunpack.c.h.b16 %v75
    %v262 = vunpack.c.l.b16 %v76
    %v263 = vunpack.c.h.b16 %v76
    %v264 = vunpack.c.l.b16 %v77
    %v265 = vunpack.c.h.b16 %v77
    %v266 = vunpack.c.l.b16 %v78
    %v267 = vunpack.c.h.b16 %v78
    %v268 = vunpack.c.l.b16 %v79
    %v269 = vunpack.c.h.b16 %v79
    %v270 = vunpack.c.l.b16 %v80
    %v271 = vunpack.c.h.b16 %v80
    %v272 = vunpack.c.l.b16 %v81
    %v273 = vunpack.c.h.b16 %v81
    %v274 = vunpack.c.l.b16 %v82
    %v275 = vunpack.c.h.b16 %v82
    %v276 = vunpack.c.l.b16 %v83
    %v277 = vunpack.c.h.b16 %v83
    %v278 = vunpack.c.l.b16 %v84
    %v279 = vunpack.c.h.b16 %v84
    %v280 = vunpack.c.l.b16 %v85
    %v281 = vunpack.c.h.b16 %v85
    %v282 = vunpack.c.l.b16 %v86
    %v283 = vunpack.c.h.b16 %v86
    %v284 = vunpack.c.l.b16 %v87
    %v285 = vunpack.c.h.b16 %v87
    %v286 = vunpack.c.l.b16 %v88
    %v287 = vunpack.c.h.b16 %v88
    %v288 = vunpack.c.l.b16 %v89
    %v289 = vunpack.c.h.b16 %v89
    %v290 = vunpack.c.l.b16 %v90
    %v291 = vunpack.c.h.b16 %v90
    %v292 = vunpack.c.l.b16 %v91
    %v293 = vunpack.c.h.b16 %v91
    %v294 = vunpack.c.l.b16 %v92
    %v295 = vunpack.c.h.b16 %v92
    %v296 = vunpack.c.l.b16 %v93
    %v297 = vunpack.c.h.b16 %v93
    %v298 = vunpack.c.l.b16 %v94
    %v299 = vunpack.c.h.b16 %v94
    %v300 = vunpack.c.l.b16 %v95
    %v301 = vunpack.c.h.b16 %v95
    %v302 = vunpack.c.l.b16 %v96
    %v303 = vunpack.c.h.b16 %v96
    %v304 = vunpack.c.l.b16 %v97
    %v305 = vunpack.c.h.b16 %v97
    %v306 = vunpack.c.l.b16 %v98
    %v307 = vunpack.c.h.b16 %v98
    %v308 = vunpack.c.l.b16 %v99
    %v309 = vunpack.c.h.b16 %v99
    %v310 = vunpack.c.l.b16 %v100
    %v311 = vunpack.c.h.b16 %v100
    %v312 = vunpack.c.l.b16 %v101
    %v313 = vunpack.c.h.b16 %v101
    %v314 = vunpack.c.l.b16 %v102
    %v315 = vunpack.c.h.b16 %v102
    %v316 = vunpack.c.l.b16 %v103
    %v317 = vunpack.c.h.b16 %v103
    %v318 = vunpack.c.l.b16 %v104
    %v319 = vunpack.c.h.b16 %v104
    %v320 = vunpack.c.l.b16 %v105
    %v321 = vunpack.c.h.b16 %v105
    %v322 = vunpack.c.l.b16 %v106
    %v323 = vunpack.c.h.b16 %v106
    %v324 = vunpack.c.l.b16 %v107
    %v325 = vunpack.c.h.b16 %v107
    %v326 = vpack.c.b16 %v200, %v198
    %v327 = vpack.c.b16 %v201, %v199
    %v328 = vpack.c.b16 %v204, %v202
    %v329 = vpack.c.b16 %v205, %v203
    %v330 = vpack.c.b16 %v208, %v206
    %v331 = vpack.c.b16 %v209, %v207
    %v332 = vpack.c.b16 %v212, %v210
    %v333 = vpack.c.b16 %v213, %v211
    %v334 = vpack.c.b16 %v216, %v214
    %v335 = vpack.c.b16 %v217, %v215
    %v336 = vpack.c.b16 %v220, %v218
    %v337 = vpack.c.b16 %v221, %v219
    %v338 = vpack.c.b16 %v224, %v222
    %v339 = vpack.c.b16 %v225, %v223
    %v340 = vpack.c.b16 %v228, %v226
    %v341 = vpack.c.b16 %v229, %v227
    %v342 = vpack.c.b16 %v232, %v230
    %v343 = vpack.c.b16 %v233, %v231
    %v344 = vpack.c.b16 %v236, %v234
    %v345 = vpack.c.b16 %v237, %v235
    %v346 = vpack.c.b16 %v240, %v238
    %v347 = vpack.c.b16 %v241, %v239
    %v348 = vpack.c.b16 %v244, %v242
    %v349 = vpack.c.b16 %v245, %v243
    %v350 = vpack.c.b16 %v248, %v246
    %v351 = vpack.c.b16 %v249, %v247
    %v352 = vpack.c.b16 %v252, %v250
    %v353 = vpack.c.b16 %v253, %v251
    %v354 = vpack.c.b16 %v256, %v254
    %v355 = vpack.c.b16 %v257, %v255
    %v356 = vpack.c.b16 %v260, %v258
    %v357 = vpack.c.b16 %v261, %v259
    %v358 = vpack.c.b16 %v264, %v262
    %v359 = vpack.c.b16 %v265, %v263
    %v360 = vpack.c.b16 %v268, %v266
    %v361 = vpack.c.b16 %v269, %v267
    %v362 = vpack.c.b16 %v272, %v270
    %v363 = vpack.c.b16 %v273, %v271
    %v364 = vpack.c.b16 %v276, %v274
    %v365 = vpack.c.b16 %v277, %v275
    %v366 = vpack.c.b16 %v280, %v278
    %v367 = vpack.c.b16 %v281, %v279
    %v368 = vpack.c.b16 %v284, %v282
    %v369 = vpack.c.b16 %v285, %v283
    %v370 = vpack.c.b16 %v288, %v286
    %v371 = vpack.c.b16 %v289, %v287
    %v372 = vpack.c.b16 %v292, %v290
    %v373 = vpack.c.b16 %v293, %v291
    %v374 = vpack.c.b16 %v296, %v294
    %v375 = vpack.c.b16 %v297, %v295
    %v376 = vpack.c.b16 %v300, %v298
    %v377 = vpack.c.b16 %v301, %v299
    %v378 = vpack.c.b16 %v304, %v302
    %v379 = vpack.c.b16 %v305, %v303
    %v380 = vpack.c.b16 %v308, %v306
    %v381 = vpack.c.b16 %v309, %v307
    %v382 = vpack.c.b16 %v312, %v310
    %v383 = vpack.c.b16 %v313, %v311
    %v384 = vpack.c.b16 %v316, %v314
    %v385 = vpack.c.b16 %v317, %v315
    %v386 = vpack.c.b16 %v320, %v318
    %v387 = vpack.c.b16 %v321, %v319
    %v388 = vpack.c.b16 %v324, %v322
    %v389 = vpack.c.b16 %v325, %v323
    %454 = vmatprep.subr.bf16.mxu0 %v327
    %455 = vmatpush1.bf16.msra.mxu0 %v326
    %456 = vmatprep.subr.bf16.mxu0 %v329
    %457 = vmatpush1.bf16.msra.mxu0 %v328
    %458 = vmatprep.subr.bf16.mxu0 %v331
    %459 = vmatpush1.bf16.msra.mxu0 %v330
    %460 = vmatprep.subr.bf16.mxu0 %v333
    %461 = vmatpush1.bf16.msra.mxu0 %v332
    %462 = vmatprep.subr.bf16.mxu0 %v335
    %463 = vmatpush1.bf16.msra.mxu0 %v334
    %464 = vmatprep.subr.bf16.mxu0 %v337
    %465 = vmatpush1.bf16.msra.mxu0 %v336
    %466 = vmatprep.subr.bf16.mxu0 %v339
    %467 = vmatpush1.bf16.msra.mxu0 %v338
    %468 = vmatprep.subr.bf16.mxu0 %v341
    %469 = vmatpush1.bf16.msra.mxu0 %v340
    %470 = vmatprep.subr.bf16.mxu0 %v343
    %471 = vmatpush1.bf16.msra.mxu0 %v342
    %472 = vmatprep.subr.bf16.mxu0 %v345
    %473 = vmatpush1.bf16.msra.mxu0 %v344
    %474 = vmatprep.subr.bf16.mxu0 %v347
    %475 = vmatpush1.bf16.msra.mxu0 %v346
    %476 = vmatprep.subr.bf16.mxu0 %v349
    %477 = vmatpush1.bf16.msra.mxu0 %v348
    %478 = vmatprep.subr.bf16.mxu0 %v351
    %479 = vmatpush1.bf16.msra.mxu0 %v350
    %480 = vmatprep.subr.bf16.mxu0 %v353
    %481 = vmatpush1.bf16.msra.mxu0 %v352
    %482 = vmatprep.subr.bf16.mxu0 %v355
    %483 = vmatpush1.bf16.msra.mxu0 %v354
    %484 = vmatprep.subr.bf16.mxu0 %v357
    %485 = vmatpush1.bf16.msra.mxu0 %v356
    %486 = vmatprep.mubr.bf16.mxu0 %v127
    %487 = vmatmul.mubr.bf16.gmra.mrb[0].mxu0 %v126
    %v488 = vpop.f32.mrb[0].mxu0
    %v489 = vadd.f32 %v113, %v488
    %v490 = vpop.f32.mrb[0].mxu0
    %v491 = vadd.f32 %v117, %v490
    %v492 = vpop.f32.mrb[0].mxu0
    %v493 = vpop.f32.mrb[0].mxu0
    %494 = vdwg.mxu0
    %495 = vmatprep.subr.bf16.mxu0 %v359
    %496 = vmatpush1.bf16.msra.mxu0 %v358
    %497 = vmatprep.subr.bf16.mxu0 %v361
    %498 = vmatpush1.bf16.msra.mxu0 %v360
    %499 = vmatprep.subr.bf16.mxu0 %v363
    %500 = vmatpush1.bf16.msra.mxu0 %v362
    %501 = vmatprep.subr.bf16.mxu0 %v365
    %502 = vmatpush1.bf16.msra.mxu0 %v364
    %503 = vmatprep.subr.bf16.mxu0 %v367
    %504 = vmatpush1.bf16.msra.mxu0 %v366
    %505 = vmatprep.subr.bf16.mxu0 %v369
    %506 = vmatpush1.bf16.msra.mxu0 %v368
    %507 = vmatprep.subr.bf16.mxu0 %v371
    %508 = vmatpush1.bf16.msra.mxu0 %v370
    %509 = vmatprep.subr.bf16.mxu0 %v373
    %510 = vmatpush1.bf16.msra.mxu0 %v372
    %511 = vmatprep.subr.bf16.mxu0 %v375
    %512 = vmatpush1.bf16.msra.mxu0 %v374
    %513 = vmatprep.subr.bf16.mxu0 %v377
    %514 = vmatpush1.bf16.msra.mxu0 %v376
    %515 = vmatprep.subr.bf16.mxu0 %v379
    %516 = vmatpush1.bf16.msra.mxu0 %v378
    %517 = vmatprep.subr.bf16.mxu0 %v381
    %518 = vmatpush1.bf16.msra.mxu0 %v380
    %519 = vmatprep.subr.bf16.mxu0 %v383
    %520 = vmatpush1.bf16.msra.mxu0 %v382
    %521 = vmatprep.subr.bf16.mxu0 %v385
    %522 = vmatpush1.bf16.msra.mxu0 %v384
    %523 = vmatprep.subr.bf16.mxu0 %v387
    %524 = vmatpush1.bf16.msra.mxu0 %v386
    %525 = vmatprep.subr.bf16.mxu0 %v389
    %526 = vmatpush1.bf16.msra.mxu0 %v388
    %527 = vmatprep.mubr.bf16.mxu0 %v129
    %528 = vmatmul.mubr.bf16.gmra.mrb[0].mxu0 %v128
    %v529 = vpop.f32.mrb[0].mxu0
    %v530 = vadd.f32 %v489, %v529
    %v531 = vpop.f32.mrb[0].mxu0
    %v532 = vadd.f32 %v491, %v531
    %v533 = vpop.f32.mrb[0].mxu0
    %v534 = vpop.f32.mrb[0].mxu0
    %535 = vdwg.mxu0
    %v536 = vmax.f32 %v530, 0.0
    %v537 = vmax.f32 %v532, 0.0
    %v538 = vpack.c.bf16 %v536, %v536
    %v539 = vpack.c.bf16 %v537, %v537
    %v540 = vld [vmem:[%s3] sm:$0xf]
    %v541 = vld [vmem:[%s3 + $0x4] sm:$0xf]
    %v542 = vld [vmem:[%s3 + $0x8] sm:$0xf]
    %v543 = vld [vmem:[%s3 + $0xc] sm:$0xf]
    %v544 = vld [vmem:[%s3 + $0x10] sm:$0xf]
    %v545 = vld [vmem:[%s3 + $0x14] sm:$0xf]
    %v546 = vld [vmem:[%s3 + $0x18] sm:$0xf]
    %v547 = vld [vmem:[%s3 + $0x1c] sm:$0xf]
    %v548 = vld [vmem:[%s3 + $0x20] sm:$0xf]
    %v549 = vld [vmem:[%s3 + $0x24] sm:$0xf]
    %v550 = vld [vmem:[%s3 + $0x28] sm:$0xf]
    %v551 = vld [vmem:[%s3 + $0x2c] sm:$0xf]
    %v552 = vld [vmem:[%s3 + $0x30] sm:$0xf]
    %v553 = vld [vmem:[%s3 + $0x34] sm:$0xf]
    %v554 = vld [vmem:[%s3 + $0x38] sm:$0xf]
    %v555 = vld [vmem:[%s3 + $0x3c] sm:$0xf]
    %v556 = vld [vmem:[%s3 + $0x40] sm:$0xf]
    %v557 = vld [vmem:[%s3 + $0x44] sm:$0xf]
    %v558 = vld [vmem:[%s3 + $0x48] sm:$0xf]
    %v559 = vld [vmem:[%s3 + $0x4c] sm:$0xf]
    %v560 = vld [vmem:[%s3 + $0x50] sm:$0xf]
    %v561 = vld [vmem:[%s3 + $0x54] sm:$0xf]
    %v562 = vld [vmem:[%s3 + $0x58] sm:$0xf]
    %v563 = vld [vmem:[%s3 + $0x5c] sm:$0xf]
    %v564 = vld [vmem:[%s3 + $0x60] sm:$0xf]
    %v565 = vld [vmem:[%s3 + $0x64] sm:$0xf]
    %v566 = vld [vmem:[%s3 + $0x68] sm:$0xf]
    %v567 = vld [vmem:[%s3 + $0x6c] sm:$0xf]
    %v568 = vld [vmem:[%s3 + $0x70] sm:$0xf]
    %v569 = vld [vmem:[%s3 + $0x74] sm:$0xf]
    %v570 = vld [vmem:[%s3 + $0x78] sm:$0xf]
    %v571 = vld [vmem:[%s3 + $0x7c] sm:$0xf]
    %v572 = vld [vmem:[%s4] sm:$0x1]
    %v574 = vlaneseq
    %v575 = vshrl.u32 %v574, 7
    %v576 = vsub.s32 0, %v575
    %v577 = vrot.slane %v572, %v576
    %v611 = vunpack.c.l.b16 %v540
    %v612 = vunpack.c.l.b16 %v541
    %v613 = vunpack.c.l.b16 %v542
    %v614 = vunpack.c.l.b16 %v543
    %v615 = vunpack.c.l.b16 %v544
    %v616 = vunpack.c.l.b16 %v545
    %v617 = vunpack.c.l.b16 %v546
    %v618 = vunpack.c.l.b16 %v547
    %v619 = vunpack.c.l.b16 %v548
    %v620 = vunpack.c.l.b16 %v549
    %v621 = vunpack.c.l.b16 %v550
    %v622 = vunpack.c.l.b16 %v551
    %v623 = vunpack.c.l.b16 %v552
    %v624 = vunpack.c.l.b16 %v553
    %v625 = vunpack.c.l.b16 %v554
    %v626 = vunpack.c.l.b16 %v555
    %v627 = vunpack.c.l.b16 %v556
    %v628 = vunpack.c.l.b16 %v557
    %v629 = vunpack.c.l.b16 %v558
    %v630 = vunpack.c.l.b16 %v559
    %v631 = vunpack.c.l.b16 %v560
    %v632 = vunpack.c.l.b16 %v561
    %v633 = vunpack.c.l.b16 %v562
    %v634 = vunpack.c.l.b16 %v563
    %v635 = vunpack.c.l.b16 %v564
    %v636 = vunpack.c.l.b16 %v565
    %v637 = vunpack.c.l.b16 %v566
    %v638 = vunpack.c.l.b16 %v567
    %v639 = vunpack.c.l.b16 %v568
    %v640 = vunpack.c.l.b16 %v569
    %v641 = vunpack.c.l.b16 %v570
    %v642 = vunpack.c.l.b16 %v571
    %v643 = vpack.c.b16 %v612, %v611
    %v644 = vpack.c.b16 %v614, %v613
    %v645 = vpack.c.b16 %v616, %v615
    %v646 = vpack.c.b16 %v618, %v617
    %v647 = vpack.c.b16 %v620, %v619
    %v648 = vpack.c.b16 %v622, %v621
    %v649 = vpack.c.b16 %v624, %v623
    %v650 = vpack.c.b16 %v626, %v625
    %v651 = vpack.c.b16 %v628, %v627
    %v652 = vpack.c.b16 %v630, %v629
    %v653 = vpack.c.b16 %v632, %v631
    %v654 = vpack.c.b16 %v634, %v633
    %v655 = vpack.c.b16 %v636, %v635
    %v656 = vpack.c.b16 %v638, %v637
    %v657 = vpack.c.b16 %v640, %v639
    %v658 = vpack.c.b16 %v642, %v641
    %675 = vmatprep.subr.bf16.mxu0 0
    %676 = vmatpush1.bf16.msra.mxu0 %v643
    %677 = vmatprep.subr.bf16.mxu0 0
    %678 = vmatpush1.bf16.msra.mxu0 %v644
    %679 = vmatprep.subr.bf16.mxu0 0
    %680 = vmatpush1.bf16.msra.mxu0 %v645
    %681 = vmatprep.subr.bf16.mxu0 0
    %682 = vmatpush1.bf16.msra.mxu0 %v646
    %683 = vmatprep.subr.bf16.mxu0 0
    %684 = vmatpush1.bf16.msra.mxu0 %v647
    %685 = vmatprep.subr.bf16.mxu0 0
    %686 = vmatpush1.bf16.msra.mxu0 %v648
    %687 = vmatprep.subr.bf16.mxu0 0
    %688 = vmatpush1.bf16.msra.mxu0 %v649
    %689 = vmatprep.subr.bf16.mxu0 0
    %690 = vmatpush1.bf16.msra.mxu0 %v650
    %691 = vmatprep.subr.bf16.mxu0 0
    %692 = vmatpush1.bf16.msra.mxu0 %v651
    %693 = vmatprep.subr.bf16.mxu0 0
    %694 = vmatpush1.bf16.msra.mxu0 %v652
    %695 = vmatprep.subr.bf16.mxu0 0
    %696 = vmatpush1.bf16.msra.mxu0 %v653
    %697 = vmatprep.subr.bf16.mxu0 0
    %698 = vmatpush1.bf16.msra.mxu0 %v654
    %699 = vmatprep.subr.bf16.mxu0 0
    %700 = vmatpush1.bf16.msra.mxu0 %v655
    %701 = vmatprep.subr.bf16.mxu0 0
    %702 = vmatpush1.bf16.msra.mxu0 %v656
    %703 = vmatprep.subr.bf16.mxu0 0
    %704 = vmatpush1.bf16.msra.mxu0 %v657
    %705 = vmatprep.subr.bf16.mxu0 0
    %706 = vmatpush1.bf16.msra.mxu0 %v658
    %707 = vmatprep.mubr.bf16.mxu0 %v539
    %708 = vmatmul.mubr.bf16.gmra.mrb[0].mxu0 %v538
    %v709 = vpop.f32.mrb[0].mxu0
    %v710 = vadd.f32 %v577, %v709
    %v711 = vpop.f32.mrb[0].mxu0
    %v712 = vpop.f32.mrb[0].mxu0
    %v713 = vpop.f32.mrb[0].mxu0
    %714 = vdwg.mxu0
    %v715 = vmax.f32 %v710, 0.0
    %v716 = vpack.c.bf16 %v715, %v715
    %v717 = vld [vmem:[%s5] sm:$0xf]
    %v718 = vld [vmem:[%s5 + $0x4] sm:$0xf]
    %v719 = vld [vmem:[%s5 + $0x8] sm:$0xf]
    %v720 = vld [vmem:[%s5 + $0xc] sm:$0xf]
    %v721 = vld [vmem:[%s5 + $0x10] sm:$0xf]
    %v722 = vld [vmem:[%s5 + $0x14] sm:$0xf]
    %v723 = vld [vmem:[%s5 + $0x18] sm:$0xf]
    %v724 = vld [vmem:[%s5 + $0x1c] sm:$0xf]
    %v725 = vld [vmem:[%s6] sm:$0x1]
    %v727 = vlaneseq
    %v728 = vshrl.u32 %v727, 7
    %v729 = vsub.s32 0, %v728
    %v730 = vrot.slane %v725, %v729
    %v740 = vunpack.c.l.b16 %v717
    %v741 = vunpack.c.l.b16 %v718
    %v742 = vunpack.c.l.b16 %v719
    %v743 = vunpack.c.l.b16 %v720
    %v744 = vunpack.c.l.b16 %v721
    %v745 = vunpack.c.l.b16 %v722
    %v746 = vunpack.c.l.b16 %v723
    %v747 = vunpack.c.l.b16 %v724
    %v748 = vpack.c.b16 %v741, %v740
    %v749 = vpack.c.b16 %v743, %v742
    %v750 = vpack.c.b16 %v745, %v744
    %v751 = vpack.c.b16 %v747, %v746
    %vm756 = vcmask 523264
    %v758 = vsel %vm756, %v716, 0
    %760 = vmatprep.subr.bf16.mxu0 0
    %761 = vmatpush1.bf16.msra.mxu0 %v748
    %762 = vmatprep.subr.bf16.mxu0 0
    %763 = vmatpush1.bf16.msra.mxu0 %v749
    %764 = vmatprep.subr.bf16.mxu0 0
    %765 = vmatpush1.bf16.msra.mxu0 %v750
    %766 = vmatprep.subr.bf16.mxu0 0
    %767 = vmatpush1.bf16.msra.mxu0 %v751
    %768 = vmatprep.subr.bf16.mxu0 0
    %769 = vmatpush1.bf16.msra.mxu0 0
    %770 = vmatprep.subr.bf16.mxu0 0
    %771 = vmatpush1.bf16.msra.mxu0 0
    %772 = vmatprep.subr.bf16.mxu0 0
    %773 = vmatpush1.bf16.msra.mxu0 0
    %774 = vmatprep.subr.bf16.mxu0 0
    %775 = vmatpush1.bf16.msra.mxu0 0
    %776 = vmatprep.subr.bf16.mxu0 0
    %777 = vmatpush1.bf16.msra.mxu0 0
    %778 = vmatprep.subr.bf16.mxu0 0
    %779 = vmatpush1.bf16.msra.mxu0 0
    %780 = vmatprep.subr.bf16.mxu0 0
    %781 = vmatpush1.bf16.msra.mxu0 0
    %782 = vmatprep.subr.bf16.mxu0 0
    %783 = vmatpush1.bf16.msra.mxu0 0
    %784 = vmatprep.subr.bf16.mxu0 0
    %785 = vmatpush1.bf16.msra.mxu0 0
    %786 = vmatprep.subr.bf16.mxu0 0
    %787 = vmatpush1.bf16.msra.mxu0 0
    %788 = vmatprep.subr.bf16.mxu0 0
    %789 = vmatpush1.bf16.msra.mxu0 0
    %790 = vmatprep.subr.bf16.mxu0 0
    %791 = vmatpush1.bf16.msra.mxu0 0
    %792 = vmatprep.mubr.bf16.mxu0 0
    %793 = vmatmul.mubr.bf16.gmra.mrb[0].mxu0 %v758
    %v794 = vpop.f32.mrb[0].mxu0
    %v795 = vadd.f32 %v730, %v794
    %v796 = vpop.f32.mrb[0].mxu0
    %v797 = vpop.f32.mrb[0].mxu0
    %v798 = vpop.f32.mrb[0].mxu0
    %799 = vdwg.mxu0
    %800 = vst [vmem:[#allocation5] sm:$0xff] %v795
    // Predicated region
    $region34: #{tpu_custom_call.1} parent=1 // pred_check
      _
    $region35: #{tpu_custom_call.1} parent=1 // pred_check_branch
      %802 = sbr.rel (0) target = $region37
    $region36: #{tpu_custom_call.1} parent=1 // pred_region
      %s804 = ssub.s32 128, 128
      %805 = vsyncadd [#allocation4], %s804
      %s807 = sshll.u32 [#allocation5], 4
      %s808 = int_to_ptr.vmem [resolvable:$true] %s807
      %810 = dma.vmem_to_hbm [thread:$0]  %s808, 128, %s7, [#allocation4]
    $region37: #{tpu_custom_call.1} parent=1 // pred_fallthru
      _
    // Predicated region
    $region38: #{tpu_custom_call.1} parent=1 // pred_check
      _
    $region39: #{tpu_custom_call.1} parent=1 // pred_check_branch
      %812 = sbr.rel (0) target = $region41
    $region40: #{tpu_custom_call.1} parent=1 // pred_region
      %813 = dma.done [#allocation4], 128
    $region41: #{tpu_custom_call.1} parent=1 // pred_fallthru
      _
    %814 = vsyncpa [#allocation3], 1
    %815 = vsyncpa [#allocation4], 1

</llo_original>
